<compile_context>
chip_gen: v7x
topology: tpu7x:2x2x1
jax: 0.10.0
libtpu: 0.0.40
codegen_flags: <defaults>
</compile_context>

<pallas_src>
import functools

import jax
import jax.numpy as jnp
from jax.experimental import pallas as pl
from jax.experimental.pallas import tpu as pltpu


def _round_up(n, m):
    return ((n + m - 1) // m) * m


def _tpu_generation_info():
    """(vmem_capacity_bytes, mxu_align) for the attached TPU, with safe fallbacks."""
    vmem_cap = 64 << 20          # conservative default (v7x per-core VMEM)
    mxu_align = 128              # safe everywhere (v4/v5 MXU tile)
    try:
        vmem_cap = int(pltpu.get_tpu_info().vmem_capacity_bytes)
    except Exception:
        pass
    try:
        kind = jax.devices()[0].device_kind.lower()
        if ("v6" in kind) or ("v7" in kind):
            mxu_align = 256      # v6e / v7x: 256x256 MXU
    except Exception:
        pass
    return vmem_cap, mxu_align


def _pad_feature(n, mxu_align):
    # Lane width is 128; dims above 128 are rounded to the MXU tile so the
    # systolic array is fully fed.
    if n <= 128:
        return 128
    return _round_up(n, mxu_align)


def prepare_mlp_params(w1, b1, w2, b2, *, mxu_align=None):
    """One-time (hoisted) transpose + pad of the fc1/fc2 parameters.

    w1: (H, I), b1: (H,), w2: (O, H), b2: (O,)  -- PyTorch nn.Linear layout.
    Zero padding is exact: padded input cols hit zero weight rows, padded
    hidden cols get bias 0 -> ReLU(0) = 0 -> multiply zero w2 rows.
    """
    if mxu_align is None:
        _, mxu_align = _tpu_generation_info()
    H, I = w1.shape
    O = w2.shape[0]
    Ip = _pad_feature(I, mxu_align)
    Hp = _pad_feature(H, mxu_align)
    Op = _pad_feature(O, mxu_align)

    if (I, H) == (Ip, Hp):
        w1_t = w1.T
    else:
        w1_t = jnp.zeros((Ip, Hp), w1.dtype).at[:I, :H].set(w1.T)
    if (H, O) == (Hp, Op):
        w2_t = w2.T
    else:
        w2_t = jnp.zeros((Hp, Op), w2.dtype).at[:H, :O].set(w2.T)
    b1_p = jnp.zeros((1, Hp), jnp.float32).at[:, :H].set(
        b1.astype(jnp.float32)[None, :])
    b2_p = jnp.zeros((1, Op), jnp.float32).at[:, :O].set(
        b2.astype(jnp.float32)[None, :])
    return {"w1_t": w1_t, "b1_p": b1_p, "w2_t": w2_t, "b2_p": b2_p,
            "I": I, "H": H, "O": O}


def _mlp_kernel_resident(x_ref, w1_ref, b1_ref, w2_ref, b2_ref, out_ref):
    # fc1: f32 MXU accumulation, bias + ReLU in f32.
    h = jnp.dot(x_ref[...], w1_ref[...], preferred_element_type=jnp.float32)
    h = jnp.maximum(h + b1_ref[...], 0.0)
    # fc2: f32 accumulation, bias in f32, cast only at the store.
    o = jnp.dot(h.astype(w2_ref.dtype), w2_ref[...],
                preferred_element_type=jnp.float32)
    out_ref[...] = (o + b2_ref[...]).astype(out_ref.dtype)


def _mlp_kernel_htiled(x_ref, w1_ref, b1_ref, w2_ref, b2_ref, out_ref, acc_ref):
    hidx = pl.program_id(1)

    @pl.when(hidx == 0)
    def _():
        acc_ref[...] = jnp.zeros_like(acc_ref)

    # Per-hidden-chunk fc1 + ReLU, then accumulate the fc2 partial product.
    h = jnp.dot(x_ref[...], w1_ref[...], preferred_element_type=jnp.float32)
    h = jnp.maximum(h + b1_ref[...], 0.0)
    acc_ref[...] += jnp.dot(h.astype(w2_ref.dtype), w2_ref[...],
                            preferred_element_type=jnp.float32)

    @pl.when(hidx == pl.num_programs(1) - 1)
    def _():
        out_ref[...] = (acc_ref[...] + b2_ref[...]).astype(out_ref.dtype)


def _param_spec(shape, use_buffered):
    """BlockSpec for a grid-invariant parameter (block index always 0)."""
    index_map = lambda *_: (0,) * len(shape)
    if use_buffered and hasattr(pl, "Buffered"):
        # Single-buffer invariant params: halves their resident VMEM footprint.
        return pl.BlockSpec(shape, index_map, pipeline_mode=pl.Buffered(1))
    return pl.BlockSpec(shape, index_map)


@functools.partial(
    jax.jit,
    static_argnames=("out_features", "tm_max", "force_h_tiling", "th",
                     "use_buffered"))
def _mlp_forward_padded(x, w1_t, b1_p, w2_t, b2_p, *, out_features,
                        tm_max=None, force_h_tiling=False, th=None,
                        use_buffered=True):
    B, I = x.shape
    Ip, Hp = w1_t.shape
    Hp2, Op = w2_t.shape
    assert Hp == Hp2, "w1/w2 hidden dims disagree after padding"
    O = out_features

    vmem_cap, _ = _tpu_generation_info()
    vmem_budget = int(vmem_cap) * 7 // 8       # ~12.5% headroom for Mosaic scratch

    x_bytes = x.dtype.itemsize
    w_bytes = w1_t.dtype.itemsize
    f32 = 4

    # Batch tile: biggest useful tile without over-padding small batches.
    sublane = 16 if x.dtype == jnp.bfloat16 else 8
    if tm_max is None:
        tm_max = 512 if vmem_cap > (96 << 20) else 256
    TM = min(tm_max, _round_up(B, sublane))
    Bp = _round_up(B, TM)

    # Pad activations (per-call data) only when needed.
    if (Bp, Ip) != (B, I):
        x_p = jnp.zeros((Bp, Ip), x.dtype).at[:B, :I].set(x)
    else:
        x_p = x

    # Resident-weights VMEM footprint: weights/biases single-buffered,
    # x/out tiles double-buffered, plus the live f32 intermediates.
    resident_need = (
        (Ip * Hp + Hp * Op) * w_bytes
        + (Hp + Op) * f32
        + 2 * TM * Ip * x_bytes
        + 2 * TM * Op * x_bytes
        + TM * Hp * f32
        + TM * Op * f32
    )

    use_h_tiling = force_h_tiling or (resident_need > vmem_budget)

    if not use_h_tiling:
        grid = (Bp // TM,)
        in_specs = [
            pl.BlockSpec((TM, Ip), lambda i: (i, 0)),   # x: pipelined over batch
            _param_spec((Ip, Hp), use_buffered),        # w1: VMEM-resident
            _param_spec((1, Hp), use_buffered),         # b1
            _param_spec((Hp, Op), use_buffered),        # w2
            _param_spec((1, Op), use_buffered),         # b2
        ]
        out_specs = pl.BlockSpec((TM, Op), lambda i: (i, 0))
        scratch_shapes = ()
        dims = ("parallel",)
        kernel = _mlp_kernel_resident
        need = resident_need
        weight_passes = 1
    else:
        # Stream the hidden dimension: per-chunk fc1 + ReLU, accumulate fc2
        # partials in an f32 scratch tile, finalize on the last chunk.
        def _chunk_need(t):
            return (2 * (Ip * t + t * Op) * w_bytes     # w1/w2 chunks, double-buffered
                    + 2 * t * f32 + Op * f32            # b1 chunks + b2
                    + 2 * TM * Ip * x_bytes
                    + 2 * TM * Op * x_bytes
                    + TM * Op * f32                     # accumulator scratch
                    + TM * t * f32)                     # live hidden chunk

        if th is not None:
            TH = th
        else:
            TH = 128
            for cand in (2048, 1024, 512, 256, 128):
                if Hp % cand:
                    continue
                if _chunk_need(cand) <= vmem_budget:
                    TH = cand
                    break
            # TODO(synk): if even TH=128 does not fit (enormous I/O), the
            # input/output feature dims would need tiling as well.
        assert Hp % TH == 0
        need = _chunk_need(TH)
        grid = (Bp // TM, Hp // TH)
        in_specs = [
            pl.BlockSpec((TM, Ip), lambda i, h: (i, 0)),
            pl.BlockSpec((Ip, TH), lambda i, h: (0, h)),
            pl.BlockSpec((1, TH), lambda i, h: (0, h)),
            pl.BlockSpec((TH, Op), lambda i, h: (h, 0)),
            _param_spec((1, Op), use_buffered),
        ]
        out_specs = pl.BlockSpec((TM, Op), lambda i, h: (i, 0))
        scratch_shapes = (pltpu.VMEM((TM, Op), jnp.float32),)
        dims = ("parallel", "arbitrary")
        kernel = _mlp_kernel_htiled
        weight_passes = Bp // TM

    vmem_limit = int(min(max(need * 5 // 4, 32 << 20), vmem_budget))

    cost = pl.CostEstimate(
        flops=2 * Bp * Ip * Hp + 2 * Bp * Hp * Op,
        bytes_accessed=(Bp * Ip + Bp * Op) * x_bytes
        + weight_passes * (Ip * Hp + Hp * Op) * w_bytes,
        transcendentals=0,
    )

    out_p = pl.pallas_call(
        kernel,
        out_shape=jax.ShapeDtypeStruct((Bp, Op), x.dtype),
        grid=grid,
        in_specs=in_specs,
        out_specs=out_specs,
        scratch_shapes=scratch_shapes,
        compiler_params=pltpu.CompilerParams(
            dimension_semantics=dims,
            vmem_limit_bytes=vmem_limit,
        ),
        cost_estimate=cost,
    )(x_p, w1_t, b1_p, w2_t, b2_p)

    if (Bp, Op) != (B, O):
        return out_p[:B, :O]
    return out_p


def mlp_forward_prepared(x, params, *, tm_max=None, force_h_tiling=False, th=None):
    """Fused MLP forward with pre-prepared (padded/transposed) parameters."""
    args = (x, params["w1_t"], params["b1_p"], params["w2_t"], params["b2_p"])
    kwargs = dict(out_features=params["O"], tm_max=tm_max,
                  force_h_tiling=force_h_tiling, th=th)
    try:
        return _mlp_forward_padded(*args, use_buffered=True, **kwargs)
    except Exception:
        # Fallback if this jax build rejects single-buffered params
        # (pipeline_mode=pl.Buffered(1)); only costs double-buffered params.
        return _mlp_forward_padded(*args, use_buffered=False, **kwargs)


def mlp_forward(x, w1, b1, w2, b2, **kwargs):
    """Convenience wrapper: param prep + fused forward.

    For repeated calls, invoke prepare_mlp_params() once and use
    mlp_forward_prepared() so the weight transpose/pad stays off the hot path.
    """
    return mlp_forward_prepared(x, prepare_mlp_params(w1, b1, w2, b2), **kwargs)


if __name__ == "__main__":
    # Small shapes consistent with MLP(input_size, hidden_size, output_size).
    batch, input_size, hidden_size, output_size = 8, 32, 64, 16

    key = jax.random.PRNGKey(0)
    k_x, k_w1, k_b1, k_w2, k_b2 = jax.random.split(key, 5)

    # PyTorch nn.Linear layout: weight (out_features, in_features).
    x = jax.random.normal(k_x, (batch, input_size), dtype=jnp.float32)
    w1 = jax.random.normal(k_w1, (hidden_size, input_size), dtype=jnp.float32) * 0.1
    b1 = jax.random.normal(k_b1, (hidden_size,), dtype=jnp.float32) * 0.1
    w2 = jax.random.normal(k_w2, (output_size, hidden_size), dtype=jnp.float32) * 0.1
    b2 = jax.random.normal(k_b2, (output_size,), dtype=jnp.float32) * 0.1

    # One-time param prep (transpose + pad), hoisted out of the hot path.
    params = prepare_mlp_params(w1, b1, w2, b2)

    out = jax.block_until_ready(mlp_forward_prepared(x, params))
    ref = jnp.maximum(x @ w1.T + b1, 0.0) @ w2.T + b2
    assert out.shape == (batch, output_size)
    assert jnp.allclose(out, ref, atol=1e-5, rtol=1e-5)

    # Also exercise the H-tiled (large-hidden / v7x) path on modest shapes.
    hidden2 = 256
    k2 = jax.random.split(jax.random.PRNGKey(1), 4)
    w1b = jax.random.normal(k2[0], (hidden2, input_size), dtype=jnp.float32) * 0.05
    b1b = jax.random.normal(k2[1], (hidden2,), dtype=jnp.float32) * 0.05
    w2b = jax.random.normal(k2[2], (output_size, hidden2), dtype=jnp.float32) * 0.05
    b2b = jax.random.normal(k2[3], (output_size,), dtype=jnp.float32) * 0.05
    params_b = prepare_mlp_params(w1b, b1b, w2b, b2b)
    out_b = jax.block_until_ready(
        mlp_forward_prepared(x, params_b, force_h_tiling=True, th=128))
    ref_b = jnp.maximum(x @ w1b.T + b1b, 0.0) @ w2b.T + b2b
    assert out_b.shape == (batch, output_size)
    assert jnp.allclose(out_b, ref_b, atol=1e-4, rtol=1e-4)

    print("KERNEL_OK")
</pallas_src>

<mosaic_0001>
module attributes {stable_mosaic.version = 11 : i64} {
  func.func @_mlp_kernel_resident(%arg0: i32, %arg1: memref<8x128xf32, #tpu.memory_space<vmem>>, %arg2: memref<128x128xf32, #tpu.memory_space<vmem>>, %arg3: memref<1x128xf32, #tpu.memory_space<vmem>>, %arg4: memref<128x128xf32, #tpu.memory_space<vmem>>, %arg5: memref<1x128xf32, #tpu.memory_space<vmem>>, %arg6: memref<8x128xf32, #tpu.memory_space<vmem>>) attributes {dimension_semantics = [#tpu.dimension_semantics<parallel>], iteration_bounds = array<i64: 1>, scalar_prefetch = 0 : i64, scratch_operands = 0 : i64, tpu.core_type = #tpu.core_type<tc>, window_params = [{transform_indices = @transform_0, window_bounds = array<i64: 8, 128>}, {pipeline_mode = #tpu.pipeline_mode<synchronous>, transform_indices = @transform_1, window_bounds = array<i64: 128, 128>}, {pipeline_mode = #tpu.pipeline_mode<synchronous>, transform_indices = @transform_2, window_bounds = array<i64: 1, 128>}, {pipeline_mode = #tpu.pipeline_mode<synchronous>, transform_indices = @transform_3, window_bounds = array<i64: 128, 128>}, {pipeline_mode = #tpu.pipeline_mode<synchronous>, transform_indices = @transform_4, window_bounds = array<i64: 1, 128>}, {transform_indices = @transform_5, window_bounds = array<i64: 8, 128>}]} {
    %c0 = arith.constant 0 : index
    %c0_0 = arith.constant 0 : index
    %0 = vector.load %arg1[%c0, %c0_0] : memref<8x128xf32, #tpu.memory_space<vmem>>, vector<8x128xf32>
    %c0_1 = arith.constant 0 : index
    %c0_2 = arith.constant 0 : index
    %1 = vector.load %arg2[%c0_1, %c0_2] : memref<128x128xf32, #tpu.memory_space<vmem>>, vector<128x128xf32>
    %cst = arith.constant dense<0.000000e+00> : vector<8x128xf32>
    %2 = tpu.matmul %0, %1, %cst {dimension_numbers = #tpu.dot_dimension_numbers<[1], [0], [0], [1], [0, 0, 1, 1], [], []>} : vector<8x128xf32>, vector<128x128xf32>, vector<8x128xf32> -> vector<8x128xf32>
    %c0_3 = arith.constant 0 : index
    %c0_4 = arith.constant 0 : index
    %3 = vector.load %arg3[%c0_3, %c0_4] : memref<1x128xf32, #tpu.memory_space<vmem>>, vector<1x128xf32>
    %4 = vector.broadcast %3 : vector<1x128xf32> to vector<8x128xf32>
    %5 = arith.addf %2, %4 : vector<8x128xf32>
    %cst_5 = arith.constant 0.000000e+00 : f32
    %6 = vector.broadcast %cst_5 : f32 to vector<8x128xf32>
    %7 = arith.maximumf %5, %6 : vector<8x128xf32>
    %c0_6 = arith.constant 0 : index
    %c0_7 = arith.constant 0 : index
    %8 = vector.load %arg4[%c0_6, %c0_7] : memref<128x128xf32, #tpu.memory_space<vmem>>, vector<128x128xf32>
    %cst_8 = arith.constant dense<0.000000e+00> : vector<8x128xf32>
    %9 = tpu.matmul %7, %8, %cst_8 {dimension_numbers = #tpu.dot_dimension_numbers<[1], [0], [0], [1], [0, 0, 1, 1], [], []>} : vector<8x128xf32>, vector<128x128xf32>, vector<8x128xf32> -> vector<8x128xf32>
    %c0_9 = arith.constant 0 : index
    %c0_10 = arith.constant 0 : index
    %10 = vector.load %arg5[%c0_9, %c0_10] : memref<1x128xf32, #tpu.memory_space<vmem>>, vector<1x128xf32>
    %11 = vector.broadcast %10 : vector<1x128xf32> to vector<8x128xf32>
    %12 = arith.addf %9, %11 : vector<8x128xf32>
    %c0_11 = arith.constant 0 : index
    %c0_12 = arith.constant 0 : index
    %13 = vector.load %arg6[%c0_11, %c0_12] : memref<8x128xf32, #tpu.memory_space<vmem>>, vector<8x128xf32>
    tpu.vector_store %arg6[%c0_11, %c0_12], %12 {strides = array<i32>} : memref<8x128xf32, #tpu.memory_space<vmem>>, vector<8x128xf32>,
    return
  }
  func.func @transform_0(%arg0: i32) -> (i32, i32) {
    %c0_i32 = arith.constant 0 : i32
    %c0_i32_0 = arith.constant 0 : i32
    return %arg0, %c0_i32 : i32, i32
  }
  func.func @transform_1(%arg0: i32) -> (i32, i32) {
    %c0_i32 = arith.constant 0 : i32
    %c0_i32_0 = arith.constant 0 : i32
    %c0_i32_1 = arith.constant 0 : i32
    return %c0_i32, %c0_i32_0 : i32, i32
  }
  func.func @transform_2(%arg0: i32) -> (i32, i32) {
    %c0_i32 = arith.constant 0 : i32
    %c0_i32_0 = arith.constant 0 : i32
    %c0_i32_1 = arith.constant 0 : i32
    return %c0_i32, %c0_i32_0 : i32, i32
  }
  func.func @transform_3(%arg0: i32) -> (i32, i32) {
    %c0_i32 = arith.constant 0 : i32
    %c0_i32_0 = arith.constant 0 : i32
    %c0_i32_1 = arith.constant 0 : i32
    return %c0_i32, %c0_i32_0 : i32, i32
  }
  func.func @transform_4(%arg0: i32) -> (i32, i32) {
    %c0_i32 = arith.constant 0 : i32
    %c0_i32_0 = arith.constant 0 : i32
    %c0_i32_1 = arith.constant 0 : i32
    return %c0_i32, %c0_i32_0 : i32, i32
  }
  func.func @transform_5(%arg0: i32) -> (i32, i32) {
    %c0_i32 = arith.constant 0 : i32
    %c0_i32_0 = arith.constant 0 : i32
    return %arg0, %c0_i32 : i32, i32
  }
}

module attributes {stable_mosaic.version = 11 : i64} {
  func.func @_mlp_kernel_resident(%arg0: i32, %arg1: memref<8x128xf32, #tpu.memory_space<vmem>>, %arg2: memref<128x128xf32, #tpu.memory_space<vmem>>, %arg3: memref<1x128xf32, #tpu.memory_space<vmem>>, %arg4: memref<128x128xf32, #tpu.memory_space<vmem>>, %arg5: memref<1x128xf32, #tpu.memory_space<vmem>>, %arg6: memref<8x128xf32, #tpu.memory_space<vmem>>) attributes {dimension_semantics = [#tpu.dimension_semantics<parallel>], iteration_bounds = array<i64: 1>, scalar_prefetch = 0 : i64, scratch_operands = 0 : i64, tpu.core_type = #tpu.core_type<tc>, window_params = [{transform_indices = @transform_0, window_bounds = array<i64: 8, 128>}, {pipeline_mode = #tpu.pipeline_mode<synchronous>, transform_indices = @transform_1, window_bounds = array<i64: 128, 128>}, {pipeline_mode = #tpu.pipeline_mode<synchronous>, transform_indices = @transform_2, window_bounds = array<i64: 1, 128>}, {pipeline_mode = #tpu.pipeline_mode<synchronous>, transform_indices = @transform_3, window_bounds = array<i64: 128, 128>}, {pipeline_mode = #tpu.pipeline_mode<synchronous>, transform_indices = @transform_4, window_bounds = array<i64: 1, 128>}, {transform_indices = @transform_5, window_bounds = array<i64: 8, 128>}]} {
    %c0 = arith.constant 0 : index
    %c0_0 = arith.constant 0 : index
    %0 = vector.load %arg1[%c0, %c0_0] : memref<8x128xf32, #tpu.memory_space<vmem>>, vector<8x128xf32>
    %c0_1 = arith.constant 0 : index
    %c0_2 = arith.constant 0 : index
    %1 = vector.load %arg2[%c0_1, %c0_2] : memref<128x128xf32, #tpu.memory_space<vmem>>, vector<128x128xf32>
    %cst = arith.constant dense<0.000000e+00> : vector<8x128xf32>
    %2 = tpu.matmul %0, %1, %cst {dimension_numbers = #tpu.dot_dimension_numbers<[1], [0], [0], [1], [0, 0, 1, 1], [], []>} : vector<8x128xf32>, vector<128x128xf32>, vector<8x128xf32> -> vector<8x128xf32>
    %c0_3 = arith.constant 0 : index
    %c0_4 = arith.constant 0 : index
    %3 = vector.load %arg3[%c0_3, %c0_4] : memref<1x128xf32, #tpu.memory_space<vmem>>, vector<1x128xf32>
    %4 = vector.broadcast %3 : vector<1x128xf32> to vector<8x128xf32>
    %5 = arith.addf %2, %4 : vector<8x128xf32>
    %cst_5 = arith.constant 0.000000e+00 : f32
    %6 = vector.broadcast %cst_5 : f32 to vector<8x128xf32>
    %7 = arith.maximumf %5, %6 : vector<8x128xf32>
    %c0_6 = arith.constant 0 : index
    %c0_7 = arith.constant 0 : index
    %8 = vector.load %arg4[%c0_6, %c0_7] : memref<128x128xf32, #tpu.memory_space<vmem>>, vector<128x128xf32>
    %cst_8 = arith.constant dense<0.000000e+00> : vector<8x128xf32>
    %9 = tpu.matmul %7, %8, %cst_8 {dimension_numbers = #tpu.dot_dimension_numbers<[1], [0], [0], [1], [0, 0, 1, 1], [], []>} : vector<8x128xf32>, vector<128x128xf32>, vector<8x128xf32> -> vector<8x128xf32>
    %c0_9 = arith.constant 0 : index
    %c0_10 = arith.constant 0 : index
    %10 = vector.load %arg5[%c0_9, %c0_10] : memref<1x128xf32, #tpu.memory_space<vmem>>, vector<1x128xf32>
    %11 = vector.broadcast %10 : vector<1x128xf32> to vector<8x128xf32>
    %12 = arith.addf %9, %11 : vector<8x128xf32>
    %c0_11 = arith.constant 0 : index
    %c0_12 = arith.constant 0 : index
    %13 = vector.load %arg6[%c0_11, %c0_12] : memref<8x128xf32, #tpu.memory_space<vmem>>, vector<8x128xf32>
    tpu.vector_store %arg6[%c0_11, %c0_12], %12 {strides = array<i32>} : memref<8x128xf32, #tpu.memory_space<vmem>>, vector<8x128xf32>,
    return
  }
  func.func @transform_0(%arg0: i32) -> (i32, i32) {
    %c0_i32 = arith.constant 0 : i32
    %c0_i32_0 = arith.constant 0 : i32
    return %arg0, %c0_i32 : i32, i32
  }
  func.func @transform_1(%arg0: i32) -> (i32, i32) {
    %c0_i32 = arith.constant 0 : i32
    %c0_i32_0 = arith.constant 0 : i32
    %c0_i32_1 = arith.constant 0 : i32
    return %c0_i32, %c0_i32_0 : i32, i32
  }
  func.func @transform_2(%arg0: i32) -> (i32, i32) {
    %c0_i32 = arith.constant 0 : i32
    %c0_i32_0 = arith.constant 0 : i32
    %c0_i32_1 = arith.constant 0 : i32
    return %c0_i32, %c0_i32_0 : i32, i32
  }
  func.func @transform_3(%arg0: i32) -> (i32, i32) {
    %c0_i32 = arith.constant 0 : i32
    %c0_i32_0 = arith.constant 0 : i32
    %c0_i32_1 = arith.constant 0 : i32
    return %c0_i32, %c0_i32_0 : i32, i32
  }
  func.func @transform_4(%arg0: i32) -> (i32, i32) {
    %c0_i32 = arith.constant 0 : i32
    %c0_i32_0 = arith.constant 0 : i32
    %c0_i32_1 = arith.constant 0 : i32
    return %c0_i32, %c0_i32_0 : i32, i32
  }
  func.func @transform_5(%arg0: i32) -> (i32, i32) {
    %c0_i32 = arith.constant 0 : i32
    %c0_i32_0 = arith.constant 0 : i32
    return %arg0, %c0_i32 : i32, i32
  }
}

</mosaic_0001>

<llo_original>
// kernel: _mlp_forward_padded.1
$region0: #{_mlp_forward_padded.1}
  #allocation0 [shape = 'u32[]', space=smem, size = 0x4, offset = 0x4, fixed_abs, tag = 'smem constant byte address 0x4 - core index']
  #allocation1 [shape = 'u32[144,128]{1,0:T(1,128)}', space=vmem, size = 0x12000, scoped, tag = 'internal scratch']
  %s0 = inlined_call_operand.vmem [shape: f32[8,128], index: 0, kind: input, shape index: {}]
  %s1 = inlined_call_operand.hbm [shape: f32[128,128], index: 1, kind: input, shape index: {}]
  %s2 = inlined_call_operand.vmem [shape: f32[1,128], index: 2, kind: input, shape index: {}]
  %s3 = inlined_call_operand.hbm [shape: f32[128,128], index: 3, kind: input, shape index: {}]
  %s4 = inlined_call_operand.vmem [shape: f32[1,128], index: 4, kind: input, shape index: {}]
  %s5 = inlined_call_operand.hbm [shape: f32[8,128], index: 5, kind: output, shape index: {}]
  %s6 = sld [smem:[#allocation0]]
  $region38: #{_mlp_forward_padded.1} parent=0
    _
  %s8 = ssub.s32 1, %s6
  %s9 = scalar_select 0, %s8, %s6
  $region1: #{_mlp_forward_padded.1} parent=0
    #allocation2 [shape = 'u8[65536]{0}', space=vmem, size = 0x10000, scoped, tag = 'input window, operand 1, single buffered']
    #allocation3 [shape = 's32[1]{0}', space=sflag, size = 0x4, scoped, tag = 'scoped memory for _mlp_forward_padded.1']
    #allocation4 [shape = 's32[1]{0}', space=sflag, size = 0x4, scoped, tag = 'scoped memory for _mlp_forward_padded.1']
    #allocation5 [shape = 'u8[65536]{0}', space=vmem, size = 0x10000, scoped, tag = 'input window, operand 3, single buffered']
    #allocation6 [shape = 's32[1]{0}', space=sflag, size = 0x4, scoped, tag = 'scoped memory for _mlp_forward_padded.1']
    #allocation7 [shape = 'u8[4096]{0}', space=vmem, size = 0x1000, scoped, tag = 'output window, operand 0, single buffered']
    %10 = vsyncpa [#allocation3], 0
    %11 = vsyncpa [#allocation6], 0
    %12 = vsyncpa [#allocation4], 0
    // Predicated region
    $region2: #{_mlp_forward_padded.1} parent=1 // pred_check
      _
    $region3: #{_mlp_forward_padded.1} parent=1 // pred_check_branch
      %14 = sbr.rel (0) target = $region5
    $region4: #{_mlp_forward_padded.1} parent=1 // pred_region
      _
    $region5: #{_mlp_forward_padded.1} parent=1 // pred_fallthru
      _
    // Predicated region
    $region6: #{_mlp_forward_padded.1} parent=1 // pred_check
      _
    $region7: #{_mlp_forward_padded.1} parent=1 // pred_check_branch
      %16 = sbr.rel (0) target = $region9
    $region8: #{_mlp_forward_padded.1} parent=1 // pred_region
      %s18 = ssub.s32 2048, 2048
      %19 = vsyncadd [#allocation3], %s18
      %s20 = sshll.u32 [#allocation2], 4
      %s21 = int_to_ptr.vmem [resolvable:$true] %s20
      %26 = dma.hbm_to_vmem [thread:$0]  %s1, 2048, %s21, [#allocation3], 128, 128, 8
    $region9: #{_mlp_forward_padded.1} parent=1 // pred_fallthru
      _
    // Predicated region
    $region10: #{_mlp_forward_padded.1} parent=1 // pred_check
      _
    $region11: #{_mlp_forward_padded.1} parent=1 // pred_check_branch
      %28 = sbr.rel (0) target = $region13
    $region12: #{_mlp_forward_padded.1} parent=1 // pred_region
      _
    $region13: #{_mlp_forward_padded.1} parent=1 // pred_fallthru
      _
    // Predicated region
    $region14: #{_mlp_forward_padded.1} parent=1 // pred_check
      _
    $region15: #{_mlp_forward_padded.1} parent=1 // pred_check_branch
      %30 = sbr.rel (0) target = $region17
    $region16: #{_mlp_forward_padded.1} parent=1 // pred_region
      %s32 = ssub.s32 2048, 2048
      %33 = vsyncadd [#allocation6], %s32
      %s34 = sshll.u32 [#allocation5], 4
      %s35 = int_to_ptr.vmem [resolvable:$true] %s34
      %40 = dma.hbm_to_vmem [thread:$0]  %s3, 2048, %s35, [#allocation6], 128, 128, 8
    $region17: #{_mlp_forward_padded.1} parent=1 // pred_fallthru
      _
    // Predicated region
    $region18: #{_mlp_forward_padded.1} parent=1 // pred_check
      _
    $region19: #{_mlp_forward_padded.1} parent=1 // pred_check_branch
      %42 = sbr.rel (0) target = $region21
    $region20: #{_mlp_forward_padded.1} parent=1 // pred_region
      _
    $region21: #{_mlp_forward_padded.1} parent=1 // pred_fallthru
      _
    // Predicated region
    $region22: #{_mlp_forward_padded.1} parent=1 // pred_check
      _
    $region23: #{_mlp_forward_padded.1} parent=1 // pred_check_branch
      %44 = sbr.rel (0) target = $region25
    $region24: #{_mlp_forward_padded.1} parent=1 // pred_region
      %45 = dma.done [#allocation3], 2048
    $region25: #{_mlp_forward_padded.1} parent=1 // pred_fallthru
      _
    // Predicated region
    $region26: #{_mlp_forward_padded.1} parent=1 // pred_check
      _
    $region27: #{_mlp_forward_padded.1} parent=1 // pred_check_branch
      %47 = sbr.rel (0) target = $region29
    $region28: #{_mlp_forward_padded.1} parent=1 // pred_region
      %48 = dma.done [#allocation6], 2048
    $region29: #{_mlp_forward_padded.1} parent=1 // pred_fallthru
      _
    %v49 = vld [vmem:[%s0] sm:$0xff]
    %v50 = vld [vmem:[#allocation2] sm:$0xff]
    %v51 = vld [vmem:[#allocation2 + $0x8] sm:$0xff]
    %v52 = vld [vmem:[#allocation2 + $0x10] sm:$0xff]
    %v53 = vld [vmem:[#allocation2 + $0x18] sm:$0xff]
    %v54 = vld [vmem:[#allocation2 + $0x20] sm:$0xff]
    %v55 = vld [vmem:[#allocation2 + $0x28] sm:$0xff]
    %v56 = vld [vmem:[#allocation2 + $0x30] sm:$0xff]
    %v57 = vld [vmem:[#allocation2 + $0x38] sm:$0xff]
    %v58 = vld [vmem:[#allocation2 + $0x40] sm:$0xff]
    %v59 = vld [vmem:[#allocation2 + $0x48] sm:$0xff]
    %v60 = vld [vmem:[#allocation2 + $0x50] sm:$0xff]
    %v61 = vld [vmem:[#allocation2 + $0x58] sm:$0xff]
    %v62 = vld [vmem:[#allocation2 + $0x60] sm:$0xff]
    %v63 = vld [vmem:[#allocation2 + $0x68] sm:$0xff]
    %v64 = vld [vmem:[#allocation2 + $0x70] sm:$0xff]
    %v65 = vld [vmem:[#allocation2 + $0x78] sm:$0xff]
    %v66 = vld [vmem:[%s2] sm:$0x1]
    %v68 = vlaneseq
    %v69 = vshrl.u32 %v68, 7
    %v70 = vsub.s32 0, %v69
    %v71 = vrot.slane %v66, %v70
    %73 = vmatprep.subr.mxu0 0.0
    %74 = vmatpush1.msra.mxu0 %v50
    %75 = vmatprep.subr.mxu0 0.0
    %76 = vmatpush1.msra.mxu0 %v51
    %77 = vmatprep.subr.mxu0 0.0
    %78 = vmatpush1.msra.mxu0 %v52
    %79 = vmatprep.subr.mxu0 0.0
    %80 = vmatpush1.msra.mxu0 %v53
    %81 = vmatprep.subr.mxu0 0.0
    %82 = vmatpush1.msra.mxu0 %v54
    %83 = vmatprep.subr.mxu0 0.0
    %84 = vmatpush1.msra.mxu0 %v55
    %85 = vmatprep.subr.mxu0 0.0
    %86 = vmatpush1.msra.mxu0 %v56
    %87 = vmatprep.subr.mxu0 0.0
    %88 = vmatpush1.msra.mxu0 %v57
    %89 = vmatprep.subr.mxu0 0.0
    %90 = vmatpush1.msra.mxu0 %v58
    %91 = vmatprep.subr.mxu0 0.0
    %92 = vmatpush1.msra.mxu0 %v59
    %93 = vmatprep.subr.mxu0 0.0
    %94 = vmatpush1.msra.mxu0 %v60
    %95 = vmatprep.subr.mxu0 0.0
    %96 = vmatpush1.msra.mxu0 %v61
    %97 = vmatprep.subr.mxu0 0.0
    %98 = vmatpush1.msra.mxu0 %v62
    %99 = vmatprep.subr.mxu0 0.0
    %100 = vmatpush1.msra.mxu0 %v63
    %101 = vmatprep.subr.mxu0 0.0
    %102 = vmatpush1.msra.mxu0 %v64
    %103 = vmatprep.subr.mxu0 0.0
    %104 = vmatpush1.msra.mxu0 %v65
    %105 = vmatprep.subr.mxu0 0.0
    %106 = vmatpush1.msra.mxu0 0.0
    %107 = vmatprep.subr.mxu0 0.0
    %108 = vmatpush1.msra.mxu0 0.0
    %109 = vmatprep.subr.mxu0 0.0
    %110 = vmatpush1.msra.mxu0 0.0
    %111 = vmatprep.subr.mxu0 0.0
    %112 = vmatpush1.msra.mxu0 0.0
    %113 = vmatprep.subr.mxu0 0.0
    %114 = vmatpush1.msra.mxu0 0.0
    %115 = vmatprep.subr.mxu0 0.0
    %116 = vmatpush1.msra.mxu0 0.0
    %117 = vmatprep.subr.mxu0 0.0
    %118 = vmatpush1.msra.mxu0 0.0
    %119 = vmatprep.subr.mxu0 0.0
    %120 = vmatpush1.msra.mxu0 0.0
    %121 = vmatprep.subr.mxu0 0.0
    %122 = vmatpush1.msra.mxu0 0.0
    %123 = vmatprep.subr.mxu0 0.0
    %124 = vmatpush1.msra.mxu0 0.0
    %125 = vmatprep.subr.mxu0 0.0
    %126 = vmatpush1.msra.mxu0 0.0
    %127 = vmatprep.subr.mxu0 0.0
    %128 = vmatpush1.msra.mxu0 0.0
    %129 = vmatprep.subr.mxu0 0.0
    %130 = vmatpush1.msra.mxu0 0.0
    %131 = vmatprep.subr.mxu0 0.0
    %132 = vmatpush1.msra.mxu0 0.0
    %133 = vmatprep.subr.mxu0 0.0
    %134 = vmatpush1.msra.mxu0 0.0
    %135 = vmatprep.subr.mxu0 0.0
    %136 = vmatpush1.msra.mxu0 0.0
    %137 = vmatprep.mubr.f32.mxu0 0.0
    %138 = vmatmul.mubr.f32.gmra.mrb[0].mxu0 %v49
    %v139 = vpop.f32.mrb[0].mxu0
    %v140 = vadd.f32 %v71, %v139
    %v141 = vpop.f32.mrb[0].mxu0
    %142 = vdwg.mxu0
    %v143 = vmax.f32 %v140, 0.0
    %v144 = vld [vmem:[#allocation5] sm:$0xff]
    %v145 = vld [vmem:[#allocation5 + $0x8] sm:$0xff]
    %v146 = vld [vmem:[#allocation5 + $0x10] sm:$0xff]
    %v147 = vld [vmem:[#allocation5 + $0x18] sm:$0xff]
    %v148 = vld [vmem:[#allocation5 + $0x20] sm:$0xff]
    %v149 = vld [vmem:[#allocation5 + $0x28] sm:$0xff]
    %v150 = vld [vmem:[#allocation5 + $0x30] sm:$0xff]
    %v151 = vld [vmem:[#allocation5 + $0x38] sm:$0xff]
    %v152 = vld [vmem:[#allocation5 + $0x40] sm:$0xff]
    %v153 = vld [vmem:[#allocation5 + $0x48] sm:$0xff]
    %v154 = vld [vmem:[#allocation5 + $0x50] sm:$0xff]
    %v155 = vld [vmem:[#allocation5 + $0x58] sm:$0xff]
    %v156 = vld [vmem:[#allocation5 + $0x60] sm:$0xff]
    %v157 = vld [vmem:[#allocation5 + $0x68] sm:$0xff]
    %v158 = vld [vmem:[#allocation5 + $0x70] sm:$0xff]
    %v159 = vld [vmem:[#allocation5 + $0x78] sm:$0xff]
    %v160 = vld [vmem:[%s4] sm:$0x1]
    %v162 = vlaneseq
    %v163 = vshrl.u32 %v162, 7
    %v164 = vsub.s32 0, %v163
    %v165 = vrot.slane %v160, %v164
    %167 = vmatprep.subr.mxu0 0.0
    %168 = vmatpush1.msra.mxu0 %v144
    %169 = vmatprep.subr.mxu0 0.0
    %170 = vmatpush1.msra.mxu0 %v145
    %171 = vmatprep.subr.mxu0 0.0
    %172 = vmatpush1.msra.mxu0 %v146
    %173 = vmatprep.subr.mxu0 0.0
    %174 = vmatpush1.msra.mxu0 %v147
    %175 = vmatprep.subr.mxu0 0.0
    %176 = vmatpush1.msra.mxu0 %v148
    %177 = vmatprep.subr.mxu0 0.0
    %178 = vmatpush1.msra.mxu0 %v149
    %179 = vmatprep.subr.mxu0 0.0
    %180 = vmatpush1.msra.mxu0 %v150
    %181 = vmatprep.subr.mxu0 0.0
    %182 = vmatpush1.msra.mxu0 %v151
    %183 = vmatprep.subr.mxu0 0.0
    %184 = vmatpush1.msra.mxu0 %v152
    %185 = vmatprep.subr.mxu0 0.0
    %186 = vmatpush1.msra.mxu0 %v153
    %187 = vmatprep.subr.mxu0 0.0
    %188 = vmatpush1.msra.mxu0 %v154
    %189 = vmatprep.subr.mxu0 0.0
    %190 = vmatpush1.msra.mxu0 %v155
    %191 = vmatprep.subr.mxu0 0.0
    %192 = vmatpush1.msra.mxu0 %v156
    %193 = vmatprep.subr.mxu0 0.0
    %194 = vmatpush1.msra.mxu0 %v157
    %195 = vmatprep.subr.mxu0 0.0
    %196 = vmatpush1.msra.mxu0 %v158
    %197 = vmatprep.subr.mxu0 0.0
    %198 = vmatpush1.msra.mxu0 %v159
    %199 = vmatprep.subr.mxu0 0.0
    %200 = vmatpush1.msra.mxu0 0.0
    %201 = vmatprep.subr.mxu0 0.0
    %202 = vmatpush1.msra.mxu0 0.0
    %203 = vmatprep.subr.mxu0 0.0
    %204 = vmatpush1.msra.mxu0 0.0
    %205 = vmatprep.subr.mxu0 0.0
    %206 = vmatpush1.msra.mxu0 0.0
    %207 = vmatprep.subr.mxu0 0.0
    %208 = vmatpush1.msra.mxu0 0.0
    %209 = vmatprep.subr.mxu0 0.0
    %210 = vmatpush1.msra.mxu0 0.0
    %211 = vmatprep.subr.mxu0 0.0
    %212 = vmatpush1.msra.mxu0 0.0
    %213 = vmatprep.subr.mxu0 0.0
    %214 = vmatpush1.msra.mxu0 0.0
    %215 = vmatprep.subr.mxu0 0.0
    %216 = vmatpush1.msra.mxu0 0.0
    %217 = vmatprep.subr.mxu0 0.0
    %218 = vmatpush1.msra.mxu0 0.0
    %219 = vmatprep.subr.mxu0 0.0
    %220 = vmatpush1.msra.mxu0 0.0
    %221 = vmatprep.subr.mxu0 0.0
    %222 = vmatpush1.msra.mxu0 0.0
    %223 = vmatprep.subr.mxu0 0.0
    %224 = vmatpush1.msra.mxu0 0.0
    %225 = vmatprep.subr.mxu0 0.0
    %226 = vmatpush1.msra.mxu0 0.0
    %227 = vmatprep.subr.mxu0 0.0
    %228 = vmatpush1.msra.mxu0 0.0
    %229 = vmatprep.subr.mxu0 0.0
    %230 = vmatpush1.msra.mxu0 0.0
    %231 = vmatprep.mubr.f32.mxu0 0.0
    %232 = vmatmul.mubr.f32.gmra.mrb[0].mxu0 %v143
    %v233 = vpop.f32.mrb[0].mxu0
    %v234 = vadd.f32 %v165, %v233
    %v235 = vpop.f32.mrb[0].mxu0
    %236 = vdwg.mxu0
    %237 = vst [vmem:[#allocation7] sm:$0xff] %v234
    // Predicated region
    $region30: #{_mlp_forward_padded.1} parent=1 // pred_check
      _
    $region31: #{_mlp_forward_padded.1} parent=1 // pred_check_branch
      %239 = sbr.rel (0) target = $region33
    $region32: #{_mlp_forward_padded.1} parent=1 // pred_region
      %s241 = ssub.s32 128, 128
      %242 = vsyncadd [#allocation4], %s241
      %s244 = sshll.u32 [#allocation7], 4
      %s245 = int_to_ptr.vmem [resolvable:$true] %s244
      %247 = dma.vmem_to_hbm [thread:$0]  %s245, 128, %s5, [#allocation4]
    $region33: #{_mlp_forward_padded.1} parent=1 // pred_fallthru
      _
    // Predicated region
    $region34: #{_mlp_forward_padded.1} parent=1 // pred_check
      _
    $region35: #{_mlp_forward_padded.1} parent=1 // pred_check_branch
      %249 = sbr.rel (0) target = $region37
    $region36: #{_mlp_forward_padded.1} parent=1 // pred_region
      %250 = dma.done [#allocation4], 128
    $region37: #{_mlp_forward_padded.1} parent=1 // pred_fallthru
      _
    %251 = vsyncpa [#allocation3], 1
    %252 = vsyncpa [#allocation6], 1
    %253 = vsyncpa [#allocation4], 1

// kernel: _mlp_forward_padded.1
$region0: #{_mlp_forward_padded.1}
  #allocation0 [shape = 'u32[]', space=smem, size = 0x4, offset = 0x4, fixed_abs, tag = 'smem constant byte address 0x4 - core index']
  #allocation1 [shape = 'u32[144,128]{1,0:T(1,128)}', space=vmem, size = 0x12000, scoped, tag = 'internal scratch']
  %s0 = inlined_call_operand.vmem [shape: f32[8,128], index: 0, kind: input, shape index: {}]
  %s1 = inlined_call_operand.hbm [shape: f32[128,128], index: 1, kind: input, shape index: {}]
  %s2 = inlined_call_operand.vmem [shape: f32[1,128], index: 2, kind: input, shape index: {}]
  %s3 = inlined_call_operand.hbm [shape: f32[128,128], index: 3, kind: input, shape index: {}]
  %s4 = inlined_call_operand.vmem [shape: f32[1,128], index: 4, kind: input, shape index: {}]
  %s5 = inlined_call_operand.hbm [shape: f32[8,128], index: 5, kind: output, shape index: {}]
  %s6 = sld [smem:[#allocation0]]
  $region38: #{_mlp_forward_padded.1} parent=0
    _
  %s8 = ssub.s32 1, %s6
  %s9 = scalar_select 0, %s8, %s6
  $region1: #{_mlp_forward_padded.1} parent=0
    #allocation2 [shape = 'u8[65536]{0}', space=vmem, size = 0x10000, scoped, tag = 'input window, operand 1, single buffered']
    #allocation3 [shape = 's32[1]{0}', space=sflag, size = 0x4, scoped, tag = 'scoped memory for _mlp_forward_padded.1']
    #allocation4 [shape = 's32[1]{0}', space=sflag, size = 0x4, scoped, tag = 'scoped memory for _mlp_forward_padded.1']
    #allocation5 [shape = 'u8[65536]{0}', space=vmem, size = 0x10000, scoped, tag = 'input window, operand 3, single buffered']
    #allocation6 [shape = 's32[1]{0}', space=sflag, size = 0x4, scoped, tag = 'scoped memory for _mlp_forward_padded.1']
    #allocation7 [shape = 'u8[4096]{0}', space=vmem, size = 0x1000, scoped, tag = 'output window, operand 0, single buffered']
    %10 = vsyncpa [#allocation3], 0
    %11 = vsyncpa [#allocation6], 0
    %12 = vsyncpa [#allocation4], 0
    // Predicated region
    $region2: #{_mlp_forward_padded.1} parent=1 // pred_check
      _
    $region3: #{_mlp_forward_padded.1} parent=1 // pred_check_branch
      %14 = sbr.rel (0) target = $region5
    $region4: #{_mlp_forward_padded.1} parent=1 // pred_region
      _
    $region5: #{_mlp_forward_padded.1} parent=1 // pred_fallthru
      _
    // Predicated region
    $region6: #{_mlp_forward_padded.1} parent=1 // pred_check
      _
    $region7: #{_mlp_forward_padded.1} parent=1 // pred_check_branch
      %16 = sbr.rel (0) target = $region9
    $region8: #{_mlp_forward_padded.1} parent=1 // pred_region
      %s18 = ssub.s32 2048, 2048
      %19 = vsyncadd [#allocation3], %s18
      %s20 = sshll.u32 [#allocation2], 4
      %s21 = int_to_ptr.vmem [resolvable:$true] %s20
      %26 = dma.hbm_to_vmem [thread:$0]  %s1, 2048, %s21, [#allocation3], 128, 128, 8
    $region9: #{_mlp_forward_padded.1} parent=1 // pred_fallthru
      _
    // Predicated region
    $region10: #{_mlp_forward_padded.1} parent=1 // pred_check
      _
    $region11: #{_mlp_forward_padded.1} parent=1 // pred_check_branch
      %28 = sbr.rel (0) target = $region13
    $region12: #{_mlp_forward_padded.1} parent=1 // pred_region
      _
    $region13: #{_mlp_forward_padded.1} parent=1 // pred_fallthru
      _
    // Predicated region
    $region14: #{_mlp_forward_padded.1} parent=1 // pred_check
      _
    $region15: #{_mlp_forward_padded.1} parent=1 // pred_check_branch
      %30 = sbr.rel (0) target = $region17
    $region16: #{_mlp_forward_padded.1} parent=1 // pred_region
      %s32 = ssub.s32 2048, 2048
      %33 = vsyncadd [#allocation6], %s32
      %s34 = sshll.u32 [#allocation5], 4
      %s35 = int_to_ptr.vmem [resolvable:$true] %s34
      %40 = dma.hbm_to_vmem [thread:$0]  %s3, 2048, %s35, [#allocation6], 128, 128, 8
    $region17: #{_mlp_forward_padded.1} parent=1 // pred_fallthru
      _
    // Predicated region
    $region18: #{_mlp_forward_padded.1} parent=1 // pred_check
      _
    $region19: #{_mlp_forward_padded.1} parent=1 // pred_check_branch
      %42 = sbr.rel (0) target = $region21
    $region20: #{_mlp_forward_padded.1} parent=1 // pred_region
      _
    $region21: #{_mlp_forward_padded.1} parent=1 // pred_fallthru
      _
    // Predicated region
    $region22: #{_mlp_forward_padded.1} parent=1 // pred_check
      _
    $region23: #{_mlp_forward_padded.1} parent=1 // pred_check_branch
      %44 = sbr.rel (0) target = $region25
    $region24: #{_mlp_forward_padded.1} parent=1 // pred_region
      %45 = dma.done [#allocation3], 2048
    $region25: #{_mlp_forward_padded.1} parent=1 // pred_fallthru
      _
    // Predicated region
    $region26: #{_mlp_forward_padded.1} parent=1 // pred_check
      _
    $region27: #{_mlp_forward_padded.1} parent=1 // pred_check_branch
      %47 = sbr.rel (0) target = $region29
    $region28: #{_mlp_forward_padded.1} parent=1 // pred_region
      %48 = dma.done [#allocation6], 2048
    $region29: #{_mlp_forward_padded.1} parent=1 // pred_fallthru
      _
    %v49 = vld [vmem:[%s0] sm:$0xff]
    %v50 = vld [vmem:[#allocation2] sm:$0xff]
    %v51 = vld [vmem:[#allocation2 + $0x8] sm:$0xff]
    %v52 = vld [vmem:[#allocation2 + $0x10] sm:$0xff]
    %v53 = vld [vmem:[#allocation2 + $0x18] sm:$0xff]
    %v54 = vld [vmem:[#allocation2 + $0x20] sm:$0xff]
    %v55 = vld [vmem:[#allocation2 + $0x28] sm:$0xff]
    %v56 = vld [vmem:[#allocation2 + $0x30] sm:$0xff]
    %v57 = vld [vmem:[#allocation2 + $0x38] sm:$0xff]
    %v58 = vld [vmem:[#allocation2 + $0x40] sm:$0xff]
    %v59 = vld [vmem:[#allocation2 + $0x48] sm:$0xff]
    %v60 = vld [vmem:[#allocation2 + $0x50] sm:$0xff]
    %v61 = vld [vmem:[#allocation2 + $0x58] sm:$0xff]
    %v62 = vld [vmem:[#allocation2 + $0x60] sm:$0xff]
    %v63 = vld [vmem:[#allocation2 + $0x68] sm:$0xff]
    %v64 = vld [vmem:[#allocation2 + $0x70] sm:$0xff]
    %v65 = vld [vmem:[#allocation2 + $0x78] sm:$0xff]
    %v66 = vld [vmem:[%s2] sm:$0x1]
    %v68 = vlaneseq
    %v69 = vshrl.u32 %v68, 7
    %v70 = vsub.s32 0, %v69
    %v71 = vrot.slane %v66, %v70
    %73 = vmatprep.subr.mxu0 0.0
    %74 = vmatpush1.msra.mxu0 %v50
    %75 = vmatprep.subr.mxu0 0.0
    %76 = vmatpush1.msra.mxu0 %v51
    %77 = vmatprep.subr.mxu0 0.0
    %78 = vmatpush1.msra.mxu0 %v52
    %79 = vmatprep.subr.mxu0 0.0
    %80 = vmatpush1.msra.mxu0 %v53
    %81 = vmatprep.subr.mxu0 0.0
    %82 = vmatpush1.msra.mxu0 %v54
    %83 = vmatprep.subr.mxu0 0.0
    %84 = vmatpush1.msra.mxu0 %v55
    %85 = vmatprep.subr.mxu0 0.0
    %86 = vmatpush1.msra.mxu0 %v56
    %87 = vmatprep.subr.mxu0 0.0
    %88 = vmatpush1.msra.mxu0 %v57
    %89 = vmatprep.subr.mxu0 0.0
    %90 = vmatpush1.msra.mxu0 %v58
    %91 = vmatprep.subr.mxu0 0.0
    %92 = vmatpush1.msra.mxu0 %v59
    %93 = vmatprep.subr.mxu0 0.0
    %94 = vmatpush1.msra.mxu0 %v60
    %95 = vmatprep.subr.mxu0 0.0
    %96 = vmatpush1.msra.mxu0 %v61
    %97 = vmatprep.subr.mxu0 0.0
    %98 = vmatpush1.msra.mxu0 %v62
    %99 = vmatprep.subr.mxu0 0.0
    %100 = vmatpush1.msra.mxu0 %v63
    %101 = vmatprep.subr.mxu0 0.0
    %102 = vmatpush1.msra.mxu0 %v64
    %103 = vmatprep.subr.mxu0 0.0
    %104 = vmatpush1.msra.mxu0 %v65
    %105 = vmatprep.subr.mxu0 0.0
    %106 = vmatpush1.msra.mxu0 0.0
    %107 = vmatprep.subr.mxu0 0.0
    %108 = vmatpush1.msra.mxu0 0.0
    %109 = vmatprep.subr.mxu0 0.0
    %110 = vmatpush1.msra.mxu0 0.0
    %111 = vmatprep.subr.mxu0 0.0
    %112 = vmatpush1.msra.mxu0 0.0
    %113 = vmatprep.subr.mxu0 0.0
    %114 = vmatpush1.msra.mxu0 0.0
    %115 = vmatprep.subr.mxu0 0.0
    %116 = vmatpush1.msra.mxu0 0.0
    %117 = vmatprep.subr.mxu0 0.0
    %118 = vmatpush1.msra.mxu0 0.0
    %119 = vmatprep.subr.mxu0 0.0
    %120 = vmatpush1.msra.mxu0 0.0
    %121 = vmatprep.subr.mxu0 0.0
    %122 = vmatpush1.msra.mxu0 0.0
    %123 = vmatprep.subr.mxu0 0.0
    %124 = vmatpush1.msra.mxu0 0.0
    %125 = vmatprep.subr.mxu0 0.0
    %126 = vmatpush1.msra.mxu0 0.0
    %127 = vmatprep.subr.mxu0 0.0
    %128 = vmatpush1.msra.mxu0 0.0
    %129 = vmatprep.subr.mxu0 0.0
    %130 = vmatpush1.msra.mxu0 0.0
    %131 = vmatprep.subr.mxu0 0.0
    %132 = vmatpush1.msra.mxu0 0.0
    %133 = vmatprep.subr.mxu0 0.0
    %134 = vmatpush1.msra.mxu0 0.0
    %135 = vmatprep.subr.mxu0 0.0
    %136 = vmatpush1.msra.mxu0 0.0
    %137 = vmatprep.mubr.f32.mxu0 0.0
    %138 = vmatmul.mubr.f32.gmra.mrb[0].mxu0 %v49
    %v139 = vpop.f32.mrb[0].mxu0
    %v140 = vadd.f32 %v71, %v139
    %v141 = vpop.f32.mrb[0].mxu0
    %142 = vdwg.mxu0
    %v143 = vmax.f32 %v140, 0.0
    %v144 = vld [vmem:[#allocation5] sm:$0xff]
    %v145 = vld [vmem:[#allocation5 + $0x8] sm:$0xff]
    %v146 = vld [vmem:[#allocation5 + $0x10] sm:$0xff]
    %v147 = vld [vmem:[#allocation5 + $0x18] sm:$0xff]
    %v148 = vld [vmem:[#allocation5 + $0x20] sm:$0xff]
    %v149 = vld [vmem:[#allocation5 + $0x28] sm:$0xff]
    %v150 = vld [vmem:[#allocation5 + $0x30] sm:$0xff]
    %v151 = vld [vmem:[#allocation5 + $0x38] sm:$0xff]
    %v152 = vld [vmem:[#allocation5 + $0x40] sm:$0xff]
    %v153 = vld [vmem:[#allocation5 + $0x48] sm:$0xff]
    %v154 = vld [vmem:[#allocation5 + $0x50] sm:$0xff]
    %v155 = vld [vmem:[#allocation5 + $0x58] sm:$0xff]
    %v156 = vld [vmem:[#allocation5 + $0x60] sm:$0xff]
    %v157 = vld [vmem:[#allocation5 + $0x68] sm:$0xff]
    %v158 = vld [vmem:[#allocation5 + $0x70] sm:$0xff]
    %v159 = vld [vmem:[#allocation5 + $0x78] sm:$0xff]
    %v160 = vld [vmem:[%s4] sm:$0x1]
    %v162 = vlaneseq
    %v163 = vshrl.u32 %v162, 7
    %v164 = vsub.s32 0, %v163
    %v165 = vrot.slane %v160, %v164
    %167 = vmatprep.subr.mxu0 0.0
    %168 = vmatpush1.msra.mxu0 %v144
    %169 = vmatprep.subr.mxu0 0.0
    %170 = vmatpush1.msra.mxu0 %v145
    %171 = vmatprep.subr.mxu0 0.0
    %172 = vmatpush1.msra.mxu0 %v146
    %173 = vmatprep.subr.mxu0 0.0
    %174 = vmatpush1.msra.mxu0 %v147
    %175 = vmatprep.subr.mxu0 0.0
    %176 = vmatpush1.msra.mxu0 %v148
    %177 = vmatprep.subr.mxu0 0.0
    %178 = vmatpush1.msra.mxu0 %v149
    %179 = vmatprep.subr.mxu0 0.0
    %180 = vmatpush1.msra.mxu0 %v150
    %181 = vmatprep.subr.mxu0 0.0
    %182 = vmatpush1.msra.mxu0 %v151
    %183 = vmatprep.subr.mxu0 0.0
    %184 = vmatpush1.msra.mxu0 %v152
    %185 = vmatprep.subr.mxu0 0.0
    %186 = vmatpush1.msra.mxu0 %v153
    %187 = vmatprep.subr.mxu0 0.0
    %188 = vmatpush1.msra.mxu0 %v154
    %189 = vmatprep.subr.mxu0 0.0
    %190 = vmatpush1.msra.mxu0 %v155
    %191 = vmatprep.subr.mxu0 0.0
    %192 = vmatpush1.msra.mxu0 %v156
    %193 = vmatprep.subr.mxu0 0.0
    %194 = vmatpush1.msra.mxu0 %v157
    %195 = vmatprep.subr.mxu0 0.0
    %196 = vmatpush1.msra.mxu0 %v158
    %197 = vmatprep.subr.mxu0 0.0
    %198 = vmatpush1.msra.mxu0 %v159
    %199 = vmatprep.subr.mxu0 0.0
    %200 = vmatpush1.msra.mxu0 0.0
    %201 = vmatprep.subr.mxu0 0.0
    %202 = vmatpush1.msra.mxu0 0.0
    %203 = vmatprep.subr.mxu0 0.0
    %204 = vmatpush1.msra.mxu0 0.0
    %205 = vmatprep.subr.mxu0 0.0
    %206 = vmatpush1.msra.mxu0 0.0
    %207 = vmatprep.subr.mxu0 0.0
    %208 = vmatpush1.msra.mxu0 0.0
    %209 = vmatprep.subr.mxu0 0.0
    %210 = vmatpush1.msra.mxu0 0.0
    %211 = vmatprep.subr.mxu0 0.0
    %212 = vmatpush1.msra.mxu0 0.0
    %213 = vmatprep.subr.mxu0 0.0
    %214 = vmatpush1.msra.mxu0 0.0
    %215 = vmatprep.subr.mxu0 0.0
    %216 = vmatpush1.msra.mxu0 0.0
    %217 = vmatprep.subr.mxu0 0.0
    %218 = vmatpush1.msra.mxu0 0.0
    %219 = vmatprep.subr.mxu0 0.0
    %220 = vmatpush1.msra.mxu0 0.0
    %221 = vmatprep.subr.mxu0 0.0
    %222 = vmatpush1.msra.mxu0 0.0
    %223 = vmatprep.subr.mxu0 0.0
    %224 = vmatpush1.msra.mxu0 0.0
    %225 = vmatprep.subr.mxu0 0.0
    %226 = vmatpush1.msra.mxu0 0.0
    %227 = vmatprep.subr.mxu0 0.0
    %228 = vmatpush1.msra.mxu0 0.0
    %229 = vmatprep.subr.mxu0 0.0
    %230 = vmatpush1.msra.mxu0 0.0
    %231 = vmatprep.mubr.f32.mxu0 0.0
    %232 = vmatmul.mubr.f32.gmra.mrb[0].mxu0 %v143
    %v233 = vpop.f32.mrb[0].mxu0
    %v234 = vadd.f32 %v165, %v233
    %v235 = vpop.f32.mrb[0].mxu0
    %236 = vdwg.mxu0
    %237 = vst [vmem:[#allocation7] sm:$0xff] %v234
    // Predicated region
    $region30: #{_mlp_forward_padded.1} parent=1 // pred_check
      _
    $region31: #{_mlp_forward_padded.1} parent=1 // pred_check_branch
      %239 = sbr.rel (0) target = $region33
    $region32: #{_mlp_forward_padded.1} parent=1 // pred_region
      %s241 = ssub.s32 128, 128
      %242 = vsyncadd [#allocation4], %s241
      %s244 = sshll.u32 [#allocation7], 4
      %s245 = int_to_ptr.vmem [resolvable:$true] %s244
      %247 = dma.vmem_to_hbm [thread:$0]  %s245, 128, %s5, [#allocation4]
    $region33: #{_mlp_forward_padded.1} parent=1 // pred_fallthru
      _
    // Predicated region
    $region34: #{_mlp_forward_padded.1} parent=1 // pred_check
      _
    $region35: #{_mlp_forward_padded.1} parent=1 // pred_check_branch
      %249 = sbr.rel (0) target = $region37
    $region36: #{_mlp_forward_padded.1} parent=1 // pred_region
      %250 = dma.done [#allocation4], 128
    $region37: #{_mlp_forward_padded.1} parent=1 // pred_fallthru
      _
    %251 = vsyncpa [#allocation3], 1
    %252 = vsyncpa [#allocation6], 1
    %253 = vsyncpa [#allocation4], 1

</llo_original>
